<compile_context>
chip_gen: v7x
topology: tpu7x:2x2x1
jax: 0.10.0
libtpu: 0.0.40
codegen_flags: <defaults>
</compile_context>

<pallas_src>
import functools

import jax
import jax.numpy as jnp
from jax.experimental import pallas as pl
from jax.experimental.pallas import tpu as pltpu

EPS = 1e-5
NEG_SLOPE = 0.01


def _leaky_relu(x):
    # max(x, a*x) == leaky_relu(x) for 0 < a < 1; single VALU max per vreg.
    return jnp.maximum(x, NEG_SLOPE * x)


def mlp_kernel(x_ref,
               w1_ref, b1_ref, w2_ref, b2_ref, w3_ref, b3_ref, w4t_ref, b4_ref,
               o_ref):
    # Matmul operand dtype follows the (possibly bf16) weights; accumulate f32.
    cdt = w1_ref.dtype

    # Cast in-kernel (VPU) so x's HBM DMA stays in the caller's dtype.
    x = x_ref[...].astype(cdt)

    # fc1 (+ folded bn1) -> leaky_relu   (bias/activation stay f32)
    h = jnp.dot(x, w1_ref[...], preferred_element_type=jnp.float32) + b1_ref[...]
    h = _leaky_relu(h)
    # TODO(synk): Dropout(0.2) is identity in eval mode; no stochastic masking.

    # fc2 (+ folded bn2) -> leaky_relu
    h = jnp.dot(h.astype(cdt), w2_ref[...], preferred_element_type=jnp.float32) + b2_ref[...]
    h = _leaky_relu(h)

    # fc3 (+ folded bn3) -> leaky_relu
    h = jnp.dot(h.astype(cdt), w3_ref[...], preferred_element_type=jnp.float32) + b3_ref[...]
    h = _leaky_relu(h)

    # fc4, computed transposed: (1,16) . (tile,16) contracting the 16-dim ->
    # (1, tile).  This is the q@k.T-style contraction, and the result is
    # lane-dense (batch index on lanes), so the store below is unmasked when
    # tile is a multiple of 128 (vs ~tile/8 masked stores for a (tile,1) block).
    out_t = jnp.einsum("od,td->ot", w4t_ref[...], h.astype(cdt),
                       preferred_element_type=jnp.float32) + b4_ref[...]
    o_ref[0] = out_t.astype(o_ref.dtype)        # block is (1, 1, tile)


def _fold_bn(w, b, gamma, beta, mean, var):
    """Fold eval-mode BatchNorm1d into the preceding Linear (exact affine)."""
    s = gamma * jax.lax.rsqrt(var + EPS)          # (1, out)
    return w * s, (b - mean) * s + beta           # (in, out), (1, out)


def _round_up(n, m):
    return ((n + m - 1) // m) * m


@functools.partial(jax.jit, static_argnames=("tb", "compute_dtype"))
def mlp_forward(x, params, *, tb=2048, compute_dtype=jnp.bfloat16):
    (w1, b1, g1, be1, m1, v1,
     w2, b2, g2, be2, m2, v2,
     w3, b3, g3, be3, m3, v3,
     w4, b4) = params

    # BN folding happens at trace time, outside the kernel.
    fw1, fb1 = _fold_bn(w1, b1, g1, be1, m1, v1)
    fw2, fb2 = _fold_bn(w2, b2, g2, be2, m2, v2)
    fw3, fb3 = _fold_bn(w3, b3, g3, be3, m3, v3)
    fw4t, fb4 = w4.T, b4.reshape(1, 1)            # fc4 is computed transposed

    batch, in_dim = x.shape

    # --- batch tile ---------------------------------------------------------
    tile = min(int(tb), _round_up(batch, 8))
    tile = max(8, (tile // 8) * 8)                # multiple of 8 sublanes
    if pl.cdiv(batch, tile) < 2 and batch >= 16:
        # v7x has 2 TensorCores; the "parallel" grid axis is sharded across
        # them, so prefer at least 2 grid steps.
        tile = max(8, _round_up(pl.cdiv(batch, 2), 8))
    num_tiles = pl.cdiv(batch, tile)
    # NOTE: no jnp.pad of x (it would re-stream the whole array through HBM).
    # The partial last x block leaves stale rows in VMEM; they stay confined to
    # tail output lanes because every op here is row-independent.

    # Low-precision matmul operands: cast only the (tiny) weights here; x is
    # cast inside the kernel.  Biases / activations / accumulation stay f32.
    fw1, fw2, fw3, fw4t = (w.astype(compute_dtype) for w in (fw1, fw2, fw3, fw4t))

    weights = [fw1, fb1, fw2, fb2, fw3, fb3, fw4t, fb4]

    def resident(arr):
        # Full-array block, same block every grid step -> stays in VMEM.
        return pl.BlockSpec(arr.shape, lambda i: (0, 0))

    # --- VMEM budget (v7x physical VMEM is 64 MiB; scoped default 32 MiB) ----
    lane = lambda n: _round_up(n, 128)
    weight_bytes = sum(int(w.size) * w.dtype.itemsize for w in weights)
    per_row_bytes = (2 * lane(in_dim) * x.dtype.itemsize          # x, double-buffered
                     + 4 * (lane(128) + lane(64) + lane(16)))     # f32 h1..h3 (lane-padded)
    vmem_need = tile * per_row_bytes + 4 * weight_bytes + 2 * tile * 4
    vmem_limit = int(min(48 * 2 ** 20, max(32 * 2 ** 20, 2 * vmem_need)))

    flops = 2 * batch * (in_dim * 128 + 128 * 64 + 64 * 16 + 16 * 1)
    bytes_accessed = (batch * in_dim * x.dtype.itemsize
                      + num_tiles * tile * 4
                      + weight_bytes)

    out = pl.pallas_call(
        mlp_kernel,
        out_shape=jax.ShapeDtypeStruct((num_tiles, 1, tile), jnp.float32),
        grid=(num_tiles,),
        in_specs=[pl.BlockSpec((tile, in_dim), lambda i: (i, 0))]
                 + [resident(w) for w in weights],
        out_specs=pl.BlockSpec((1, 1, tile), lambda i: (i, 0, 0)),
        compiler_params=pltpu.CompilerParams(
            dimension_semantics=("parallel",),
            vmem_limit_bytes=vmem_limit),
        cost_estimate=pl.CostEstimate(
            flops=flops, transcendentals=0, bytes_accessed=bytes_accessed),
    )(x, *weights)

    # (num_tiles, 1, tile) -> (num_tiles*tile, 1) -> drop tail garbage rows.
    return out.reshape(-1, 1)[:batch]


def init_params(key, input_dim):
    """Deterministic parameter init matching the PyTorch module's shapes."""
    dims = [(input_dim, 128), (128, 64), (64, 16), (16, 1)]
    keys = jax.random.split(key, 4 * 2 + 3 * 4)
    ki = iter(range(len(keys)))
    params = []
    for li, (fan_in, fan_out) in enumerate(dims):
        bound = 1.0 / jnp.sqrt(float(fan_in))
        w = jax.random.uniform(keys[next(ki)], (fan_in, fan_out), jnp.float32, -bound, bound)
        b = jax.random.uniform(keys[next(ki)], (1, fan_out), jnp.float32, -bound, bound)
        params.extend([w, b])
        if li < 3:  # bn1, bn2, bn3
            gamma = 1.0 + 0.1 * jax.random.normal(keys[next(ki)], (1, fan_out), jnp.float32)
            beta = 0.1 * jax.random.normal(keys[next(ki)], (1, fan_out), jnp.float32)
            rmean = 0.05 * jax.random.normal(keys[next(ki)], (1, fan_out), jnp.float32)
            rvar = 1.0 + 0.1 * jax.random.uniform(keys[next(ki)], (1, fan_out), jnp.float32)
            params.extend([gamma, beta, rmean, rvar])
    return params


def mlp_reference(x, params):
    (w1, b1, g1, be1, m1, v1,
     w2, b2, g2, be2, m2, v2,
     w3, b3, g3, be3, m3, v3,
     w4, b4) = params
    h = x @ w1 + b1
    h = (h - m1) / jnp.sqrt(v1 + EPS) * g1 + be1
    h = jnp.where(h > 0, h, NEG_SLOPE * h)
    h = h @ w2 + b2
    h = (h - m2) / jnp.sqrt(v2 + EPS) * g2 + be2
    h = jnp.where(h > 0, h, NEG_SLOPE * h)
    h = h @ w3 + b3
    h = (h - m3) / jnp.sqrt(v3 + EPS) * g3 + be3
    h = jnp.where(h > 0, h, NEG_SLOPE * h)
    return h @ w4 + b4


if __name__ == "__main__":
    key = jax.random.PRNGKey(0)
    k_x, k_p = jax.random.split(key)

    batch, input_dim = 24, 32
    x = jax.random.normal(k_x, (batch, input_dim), jnp.float32)
    params = init_params(k_p, input_dim)
    ref = mlp_reference(x, params)

    # (1) Exact path: f32 matmul operands, small tile (tb=8 -> 3 grid steps)
    #     so the demo exercises the batch grid; strict tolerance.
    out_f32 = jax.block_until_ready(
        mlp_forward(x, params, tb=8, compute_dtype=jnp.float32))
    assert out_f32.shape == (batch, 1)
    assert jnp.allclose(out_f32, ref, atol=1e-4, rtol=1e-4), "f32 mismatch vs reference"

    # (2) Production path: bf16 matmul operands + default tile selection
    #     (exercises the partial last block and the >=2-step megacore split);
    #     looser tolerance for bf16 operand rounding.
    out_bf16 = jax.block_until_ready(
        mlp_forward(x, params, compute_dtype=jnp.bfloat16))
    assert out_bf16.shape == (batch, 1)
    assert jnp.allclose(out_bf16, ref, atol=5e-2, rtol=5e-2), "bf16 mismatch vs reference"

    print("KERNEL_OK")
</pallas_src>

<mosaic_0001>
module attributes {stable_mosaic.version = 11 : i64} {
  func.func @mlp_kernel(%arg0: i32, %arg1: memref<8x32xf32, #tpu.memory_space<vmem>>, %arg2: memref<32x128xf32, #tpu.memory_space<vmem>>, %arg3: memref<1x128xf32, #tpu.memory_space<vmem>>, %arg4: memref<128x64xf32, #tpu.memory_space<vmem>>, %arg5: memref<1x64xf32, #tpu.memory_space<vmem>>, %arg6: memref<64x16xf32, #tpu.memory_space<vmem>>, %arg7: memref<1x16xf32, #tpu.memory_space<vmem>>, %arg8: memref<1x16xf32, #tpu.memory_space<vmem>>, %arg9: memref<1x1xf32, #tpu.memory_space<vmem>>, %arg10: memref<1x1x8xf32, #tpu.memory_space<vmem>>) attributes {dimension_semantics = [#tpu.dimension_semantics<parallel>], iteration_bounds = array<i64: 3>, scalar_prefetch = 0 : i64, scratch_operands = 0 : i64, tpu.core_type = #tpu.core_type<tc>, window_params = [{transform_indices = @transform_0, window_bounds = array<i64: 8, 32>}, {pipeline_mode = #tpu.pipeline_mode<synchronous>, transform_indices = @transform_1, window_bounds = array<i64: 32, 128>}, {pipeline_mode = #tpu.pipeline_mode<synchronous>, transform_indices = @transform_2, window_bounds = array<i64: 1, 128>}, {pipeline_mode = #tpu.pipeline_mode<synchronous>, transform_indices = @transform_3, window_bounds = array<i64: 128, 64>}, {pipeline_mode = #tpu.pipeline_mode<synchronous>, transform_indices = @transform_4, window_bounds = array<i64: 1, 64>}, {pipeline_mode = #tpu.pipeline_mode<synchronous>, transform_indices = @transform_5, window_bounds = array<i64: 64, 16>}, {pipeline_mode = #tpu.pipeline_mode<synchronous>, transform_indices = @transform_6, window_bounds = array<i64: 1, 16>}, {pipeline_mode = #tpu.pipeline_mode<synchronous>, transform_indices = @transform_7, window_bounds = array<i64: 1, 16>}, {pipeline_mode = #tpu.pipeline_mode<synchronous>, transform_indices = @transform_8, window_bounds = array<i64: 1, 1>}, {transform_indices = @transform_9, window_bounds = array<i64: 1, 1, 8>}]} {
    %c0 = arith.constant 0 : index
    %c0_0 = arith.constant 0 : index
    %0 = vector.load %arg1[%c0, %c0_0] : memref<8x32xf32, #tpu.memory_space<vmem>>, vector<8x32xf32>
    %c0_1 = arith.constant 0 : index
    %c0_2 = arith.constant 0 : index
    %1 = vector.load %arg2[%c0_1, %c0_2] : memref<32x128xf32, #tpu.memory_space<vmem>>, vector<32x128xf32>
    %cst = arith.constant dense<0.000000e+00> : vector<8x128xf32>
    %2 = tpu.matmul %0, %1, %cst {dimension_numbers = #tpu.dot_dimension_numbers<[1], [0], [0], [1], [0, 0, 1, 1], [], []>} : vector<8x32xf32>, vector<32x128xf32>, vector<8x128xf32> -> vector<8x128xf32>
    %c0_3 = arith.constant 0 : index
    %c0_4 = arith.constant 0 : index
    %3 = vector.load %arg3[%c0_3, %c0_4] : memref<1x128xf32, #tpu.memory_space<vmem>>, vector<1x128xf32>
    %4 = vector.broadcast %3 : vector<1x128xf32> to vector<8x128xf32>
    %5 = arith.addf %2, %4 : vector<8x128xf32>
    %cst_5 = arith.constant 0.00999999977 : f32
    %6 = vector.broadcast %cst_5 : f32 to vector<8x128xf32>
    %7 = arith.mulf %6, %5 : vector<8x128xf32>
    %8 = arith.maximumf %5, %7 : vector<8x128xf32>
    %c0_6 = arith.constant 0 : index
    %c0_7 = arith.constant 0 : index
    %9 = vector.load %arg4[%c0_6, %c0_7] : memref<128x64xf32, #tpu.memory_space<vmem>>, vector<128x64xf32>
    %cst_8 = arith.constant dense<0.000000e+00> : vector<8x64xf32>
    %10 = tpu.matmul %8, %9, %cst_8 {dimension_numbers = #tpu.dot_dimension_numbers<[1], [0], [0], [1], [0, 0, 1, 1], [], []>} : vector<8x128xf32>, vector<128x64xf32>, vector<8x64xf32> -> vector<8x64xf32>
    %c0_9 = arith.constant 0 : index
    %c0_10 = arith.constant 0 : index
    %11 = vector.load %arg5[%c0_9, %c0_10] : memref<1x64xf32, #tpu.memory_space<vmem>>, vector<1x64xf32>
    %12 = vector.broadcast %11 : vector<1x64xf32> to vector<8x64xf32>
    %13 = arith.addf %10, %12 : vector<8x64xf32>
    %cst_11 = arith.constant 0.00999999977 : f32
    %14 = vector.broadcast %cst_11 : f32 to vector<8x64xf32>
    %15 = arith.mulf %14, %13 : vector<8x64xf32>
    %16 = arith.maximumf %13, %15 : vector<8x64xf32>
    %c0_12 = arith.constant 0 : index
    %c0_13 = arith.constant 0 : index
    %17 = vector.load %arg6[%c0_12, %c0_13] : memref<64x16xf32, #tpu.memory_space<vmem>>, vector<64x16xf32>
    %cst_14 = arith.constant dense<0.000000e+00> : vector<8x16xf32>
    %18 = tpu.matmul %16, %17, %cst_14 {dimension_numbers = #tpu.dot_dimension_numbers<[1], [0], [0], [1], [0, 0, 1, 1], [], []>} : vector<8x64xf32>, vector<64x16xf32>, vector<8x16xf32> -> vector<8x16xf32>
    %c0_15 = arith.constant 0 : index
    %c0_16 = arith.constant 0 : index
    %19 = vector.load %arg7[%c0_15, %c0_16] : memref<1x16xf32, #tpu.memory_space<vmem>>, vector<1x16xf32>
    %20 = vector.broadcast %19 : vector<1x16xf32> to vector<8x16xf32>
    %21 = arith.addf %18, %20 : vector<8x16xf32>
    %cst_17 = arith.constant 0.00999999977 : f32
    %22 = vector.broadcast %cst_17 : f32 to vector<8x16xf32>
    %23 = arith.mulf %22, %21 : vector<8x16xf32>
    %24 = arith.maximumf %21, %23 : vector<8x16xf32>
    %c0_18 = arith.constant 0 : index
    %c0_19 = arith.constant 0 : index
    %25 = vector.load %arg8[%c0_18, %c0_19] : memref<1x16xf32, #tpu.memory_space<vmem>>, vector<1x16xf32>
    "tpu.trace_start"() <{level = 10 : i32, message = "od,td->ot"}> : () -> ()
    %cst_20 = arith.constant dense<0.000000e+00> : vector<1x8xf32>
    %26 = tpu.matmul %25, %24, %cst_20 {dimension_numbers = #tpu.dot_dimension_numbers<[1], [1], [0], [0], [0, 0, 1, 0], [], []>} : vector<1x16xf32>, vector<8x16xf32>, vector<1x8xf32> -> vector<1x8xf32>
    "tpu.trace_stop"() : () -> ()
    %c0_21 = arith.constant 0 : index
    %c0_22 = arith.constant 0 : index
    %27 = vector.load %arg9[%c0_21, %c0_22] : memref<1x1xf32, #tpu.memory_space<vmem>>, vector<1x1xf32>
    %28 = vector.broadcast %27 : vector<1x1xf32> to vector<1x8xf32>
    %29 = arith.addf %26, %28 : vector<1x8xf32>
    %c0_23 = arith.constant 0 : index
    %c0_24 = arith.constant 0 : index
    %c0_25 = arith.constant 0 : index
    %30 = vector.load %arg10[%c0_23, %c0_24, %c0_25] : memref<1x1x8xf32, #tpu.memory_space<vmem>>, vector<1x1x8xf32>
    %31 = vector.shape_cast %30 : vector<1x1x8xf32> to vector<1x8xf32>
    %32 = vector.shape_cast %29 : vector<1x8xf32> to vector<1x1x8xf32>
    tpu.vector_store %arg10[%c0_23, %c0_24, %c0_25], %32 {strides = array<i32>} : memref<1x1x8xf32, #tpu.memory_space<vmem>>, vector<1x1x8xf32>,
    return
  }
  func.func @transform_0(%arg0: i32) -> (i32, i32) {
    %c0_i32 = arith.constant 0 : i32
    %c0_i32_0 = arith.constant 0 : i32
    return %arg0, %c0_i32 : i32, i32
  }
  func.func @transform_1(%arg0: i32) -> (i32, i32) {
    %c0_i32 = arith.constant 0 : i32
    %c0_i32_0 = arith.constant 0 : i32
    %c0_i32_1 = arith.constant 0 : i32
    return %c0_i32, %c0_i32_0 : i32, i32
  }
  func.func @transform_2(%arg0: i32) -> (i32, i32) {
    %c0_i32 = arith.constant 0 : i32
    %c0_i32_0 = arith.constant 0 : i32
    %c0_i32_1 = arith.constant 0 : i32
    return %c0_i32, %c0_i32_0 : i32, i32
  }
  func.func @transform_3(%arg0: i32) -> (i32, i32) {
    %c0_i32 = arith.constant 0 : i32
    %c0_i32_0 = arith.constant 0 : i32
    %c0_i32_1 = arith.constant 0 : i32
    return %c0_i32, %c0_i32_0 : i32, i32
  }
  func.func @transform_4(%arg0: i32) -> (i32, i32) {
    %c0_i32 = arith.constant 0 : i32
    %c0_i32_0 = arith.constant 0 : i32
    %c0_i32_1 = arith.constant 0 : i32
    return %c0_i32, %c0_i32_0 : i32, i32
  }
  func.func @transform_5(%arg0: i32) -> (i32, i32) {
    %c0_i32 = arith.constant 0 : i32
    %c0_i32_0 = arith.constant 0 : i32
    %c0_i32_1 = arith.constant 0 : i32
    return %c0_i32, %c0_i32_0 : i32, i32
  }
  func.func @transform_6(%arg0: i32) -> (i32, i32) {
    %c0_i32 = arith.constant 0 : i32
    %c0_i32_0 = arith.constant 0 : i32
    %c0_i32_1 = arith.constant 0 : i32
    return %c0_i32, %c0_i32_0 : i32, i32
  }
  func.func @transform_7(%arg0: i32) -> (i32, i32) {
    %c0_i32 = arith.constant 0 : i32
    %c0_i32_0 = arith.constant 0 : i32
    %c0_i32_1 = arith.constant 0 : i32
    return %c0_i32, %c0_i32_0 : i32, i32
  }
  func.func @transform_8(%arg0: i32) -> (i32, i32) {
    %c0_i32 = arith.constant 0 : i32
    %c0_i32_0 = arith.constant 0 : i32
    %c0_i32_1 = arith.constant 0 : i32
    return %c0_i32, %c0_i32_0 : i32, i32
  }
  func.func @transform_9(%arg0: i32) -> (i32, i32, i32) {
    %c0_i32 = arith.constant 0 : i32
    %c0_i32_0 = arith.constant 0 : i32
    %c0_i32_1 = arith.constant 0 : i32
    return %arg0, %c0_i32, %c0_i32_0 : i32, i32, i32
  }
}

</mosaic_0001>

<llo_original>
// kernel: mlp_forward.1
$region0: #{mlp_forward.1}
  #allocation0 [shape = 'u32[]', space=smem, size = 0x4, offset = 0x4, fixed_abs, tag = 'smem constant byte address 0x4 - core index']
  #allocation1 [shape = 'u32[144,128]{1,0:T(1,128)}', space=vmem, size = 0x12000, scoped, tag = 'internal scratch']
  #allocation2 [shape = 'f32[1,1]{1,0:T(1,128)S(1)}', space=vmem, size = 0x200, scoped, tag = 'scoped memory for mlp_forward.1']
  %s0 = inlined_call_operand.vmem [shape: f32[24,32], index: 0, kind: input, shape index: {}]
  %s1 = inlined_call_operand.vmem [shape: f32[32,128], index: 1, kind: input, shape index: {}]
  %s2 = inlined_call_operand.vmem [shape: f32[1,128], index: 2, kind: input, shape index: {}]
  %s3 = inlined_call_operand.vmem [shape: f32[128,64], index: 3, kind: input, shape index: {}]
  %s4 = inlined_call_operand.vmem [shape: f32[1,64], index: 4, kind: input, shape index: {}]
  %s5 = inlined_call_operand.vmem [shape: f32[64,16], index: 5, kind: input, shape index: {}]
  %s6 = inlined_call_operand.vmem [shape: f32[1,16], index: 6, kind: input, shape index: {}]
  %s7 = inlined_call_operand.vmem [shape: f32[1,16], index: 7, kind: input, shape index: {}]
  %s8 = inlined_call_operand.<no memory space> [shape: f32[1,1], index: 8, kind: input, shape index: {}]
  %s9 = inlined_call_operand.vmem [shape: f32[3,1,8], index: 9, kind: output, shape index: {}]
  %s10 = sld [smem:[#allocation0]]
  $region69: #{mlp_forward.1} parent=0
    _
  %s12 = ssub.s32 1, %s10
  %s13 = scalar_select 0, %s12, %s10
  %v14 = vstv %s8
  %15 = vst [vmem:[#allocation2] sm:$0x1] %v14
  loop: start=0, step=1, limit=5
  $region2: #{mlp_forward.1} parent=0 // loop_pre_header
    _
  $region3: #{mlp_forward.1} parent=0 // loop_header
    %s17 = sphi 0, %s21
    %p18 = scmp.ge.s32.totalorder %s17, 5
    %s27 = sphi 0, %s29
    %s30 = sphi 0, %s27
    %s31 = sphi 0, %s30
    %s47 = sphi 0, %s31
    %s51 = sphi 0, %s51
    %s53 = sphi 0, %s51
    %s54 = sphi 0, %s53
    %s68 = sphi 0, %s54
    %s72 = sphi 0, %s72
    %s74 = sphi 0, %s72
    %s75 = sphi 0, %s74
    %s89 = sphi 0, %s75
    %s93 = sphi 0, %s93
    %s95 = sphi 0, %s93
    %s96 = sphi 0, %s95
    %s110 = sphi 0, %s96
    %s114 = sphi 0, %s114
    %s116 = sphi 0, %s114
    %s117 = sphi 0, %s116
    %s131 = sphi 0, %s117
    %s135 = sphi 0, %s135
    %s137 = sphi 0, %s135
    %s138 = sphi 0, %s137
    %s152 = sphi 0, %s138
    %s156 = sphi 0, %s156
    %s158 = sphi 0, %s156
    %s159 = sphi 0, %s158
    %s173 = sphi 0, %s159
    %s177 = sphi 0, %s177
    %s179 = sphi 0, %s177
    %s180 = sphi 0, %s179
    %s194 = sphi 0, %s180
    %s198 = sphi 0, %s198
    %s200 = sphi 0, %s198
    %s201 = sphi 0, %s200
    %s215 = sphi 0, %s201
    %s221 = sphi 0, %s223
    %s224 = sphi 0, %s221
    %s225 = sphi 0, %s224
    %s241 = sphi 0, %s225
  $region4: #{mlp_forward.1} parent=0 // loop_header_branch
    %20 = sbr.rel (%p18) target = $region8
  $region5: #{mlp_forward.1} parent=0 // loop_body
    %s22 = ssub.s32 %s17, 1
    %s23 = ssub.s32 %s17, 2
    %s24 = sadd.s32 %s17, 1
    %s25 = ssub.s32 %s17, %s24
    %p26 = scmp.eq.s32.totalorder %s25, 0
    %s28 = sadd.s32 %s27, 1
    %s29 = scalar_select %p26, %s27, %s28
    %p32 = pneg %p26
    %p33 = scmp.eq.s32.totalorder %s17, 2
    %p34 = por %p32, %p33
    %p35 = scmp.ne.s32.totalorder %s27, %s30
    %p36 = scmp.eq.s32.totalorder %s17, 0
    %p37 = por %p35, %p36
    %p38 = scmp.ne.s32.totalorder %s27, %s30
    %p39 = scmp.eq.s32.totalorder %s22, 2
    %p40 = por %p38, %p39
    %p41 = scmp.ne.s32.totalorder %s30, %s31
    %p42 = scmp.eq.s32.totalorder %s22, 0
    %p43 = por %p41, %p42
    %p44 = scmp.ne.s32.totalorder %s30, %s31
    %p45 = scmp.eq.s32.totalorder %s23, 2
    %p46 = por %p44, %p45
    %p48 = scmp.ne.s32.totalorder %s31, %s47
    %p49 = scmp.eq.s32.totalorder %s23, 0
    %p50 = por %p48, %p49
    %s52 = sadd.s32 %s51, 1
    %p55 = scmp.eq.s32.totalorder %s17, 2
    %p56 = scmp.ne.s32.totalorder %s51, %s53
    %p57 = scmp.eq.s32.totalorder %s17, 0
    %p58 = por %p56, %p57
    %p59 = scmp.ne.s32.totalorder %s51, %s53
    %p60 = scmp.eq.s32.totalorder %s22, 2
    %p61 = por %p59, %p60
    %p62 = scmp.ne.s32.totalorder %s53, %s54
    %p63 = scmp.eq.s32.totalorder %s22, 0
    %p64 = por %p62, %p63
    %p65 = scmp.ne.s32.totalorder %s53, %s54
    %p66 = scmp.eq.s32.totalorder %s23, 2
    %p67 = por %p65, %p66
    %p69 = scmp.ne.s32.totalorder %s54, %s68
    %p70 = scmp.eq.s32.totalorder %s23, 0
    %p71 = por %p69, %p70
    %s73 = sadd.s32 %s72, 1
    %p76 = scmp.eq.s32.totalorder %s17, 2
    %p77 = scmp.ne.s32.totalorder %s72, %s74
    %p78 = scmp.eq.s32.totalorder %s17, 0
    %p79 = por %p77, %p78
    %p80 = scmp.ne.s32.totalorder %s72, %s74
    %p81 = scmp.eq.s32.totalorder %s22, 2
    %p82 = por %p80, %p81
    %p83 = scmp.ne.s32.totalorder %s74, %s75
    %p84 = scmp.eq.s32.totalorder %s22, 0
    %p85 = por %p83, %p84
    %p86 = scmp.ne.s32.totalorder %s74, %s75
    %p87 = scmp.eq.s32.totalorder %s23, 2
    %p88 = por %p86, %p87
    %p90 = scmp.ne.s32.totalorder %s75, %s89
    %p91 = scmp.eq.s32.totalorder %s23, 0
    %p92 = por %p90, %p91
    %s94 = sadd.s32 %s93, 1
    %p97 = scmp.eq.s32.totalorder %s17, 2
    %p98 = scmp.ne.s32.totalorder %s93, %s95
    %p99 = scmp.eq.s32.totalorder %s17, 0
    %p100 = por %p98, %p99
    %p101 = scmp.ne.s32.totalorder %s93, %s95
    %p102 = scmp.eq.s32.totalorder %s22, 2
    %p103 = por %p101, %p102
    %p104 = scmp.ne.s32.totalorder %s95, %s96
    %p105 = scmp.eq.s32.totalorder %s22, 0
    %p106 = por %p104, %p105
    %p107 = scmp.ne.s32.totalorder %s95, %s96
    %p108 = scmp.eq.s32.totalorder %s23, 2
    %p109 = por %p107, %p108
    %p111 = scmp.ne.s32.totalorder %s96, %s110
    %p112 = scmp.eq.s32.totalorder %s23, 0
    %p113 = por %p111, %p112
    %s115 = sadd.s32 %s114, 1
    %p118 = scmp.eq.s32.totalorder %s17, 2
    %p119 = scmp.ne.s32.totalorder %s114, %s116
    %p120 = scmp.eq.s32.totalorder %s17, 0
    %p121 = por %p119, %p120
    %p122 = scmp.ne.s32.totalorder %s114, %s116
    %p123 = scmp.eq.s32.totalorder %s22, 2
    %p124 = por %p122, %p123
    %p125 = scmp.ne.s32.totalorder %s116, %s117
    %p126 = scmp.eq.s32.totalorder %s22, 0
    %p127 = por %p125, %p126
    %p128 = scmp.ne.s32.totalorder %s116, %s117
    %p129 = scmp.eq.s32.totalorder %s23, 2
    %p130 = por %p128, %p129
    %p132 = scmp.ne.s32.totalorder %s117, %s131
    %p133 = scmp.eq.s32.totalorder %s23, 0
    %p134 = por %p132, %p133
    %s136 = sadd.s32 %s135, 1
    %p139 = scmp.eq.s32.totalorder %s17, 2
    %p140 = scmp.ne.s32.totalorder %s135, %s137
    %p141 = scmp.eq.s32.totalorder %s17, 0
    %p142 = por %p140, %p141
    %p143 = scmp.ne.s32.totalorder %s135, %s137
    %p144 = scmp.eq.s32.totalorder %s22, 2
    %p145 = por %p143, %p144
    %p146 = scmp.ne.s32.totalorder %s137, %s138
    %p147 = scmp.eq.s32.totalorder %s22, 0
    %p148 = por %p146, %p147
    %p149 = scmp.ne.s32.totalorder %s137, %s138
    %p150 = scmp.eq.s32.totalorder %s23, 2
    %p151 = por %p149, %p150
    %p153 = scmp.ne.s32.totalorder %s138, %s152
    %p154 = scmp.eq.s32.totalorder %s23, 0
    %p155 = por %p153, %p154
    %s157 = sadd.s32 %s156, 1
    %p160 = scmp.eq.s32.totalorder %s17, 2
    %p161 = scmp.ne.s32.totalorder %s156, %s158
    %p162 = scmp.eq.s32.totalorder %s17, 0
    %p163 = por %p161, %p162
    %p164 = scmp.ne.s32.totalorder %s156, %s158
    %p165 = scmp.eq.s32.totalorder %s22, 2
    %p166 = por %p164, %p165
    %p167 = scmp.ne.s32.totalorder %s158, %s159
    %p168 = scmp.eq.s32.totalorder %s22, 0
    %p169 = por %p167, %p168
    %p170 = scmp.ne.s32.totalorder %s158, %s159
    %p171 = scmp.eq.s32.totalorder %s23, 2
    %p172 = por %p170, %p171
    %p174 = scmp.ne.s32.totalorder %s159, %s173
    %p175 = scmp.eq.s32.totalorder %s23, 0
    %p176 = por %p174, %p175
    %s178 = sadd.s32 %s177, 1
    %p181 = scmp.eq.s32.totalorder %s17, 2
    %p182 = scmp.ne.s32.totalorder %s177, %s179
    %p183 = scmp.eq.s32.totalorder %s17, 0
    %p184 = por %p182, %p183
    %p185 = scmp.ne.s32.totalorder %s177, %s179
    %p186 = scmp.eq.s32.totalorder %s22, 2
    %p187 = por %p185, %p186
    %p188 = scmp.ne.s32.totalorder %s179, %s180
    %p189 = scmp.eq.s32.totalorder %s22, 0
    %p190 = por %p188, %p189
    %p191 = scmp.ne.s32.totalorder %s179, %s180
    %p192 = scmp.eq.s32.totalorder %s23, 2
    %p193 = por %p191, %p192
    %p195 = scmp.ne.s32.totalorder %s180, %s194
    %p196 = scmp.eq.s32.totalorder %s23, 0
    %p197 = por %p195, %p196
    %s199 = sadd.s32 %s198, 1
    %p202 = scmp.eq.s32.totalorder %s17, 2
    %p203 = scmp.ne.s32.totalorder %s198, %s200
    %p204 = scmp.eq.s32.totalorder %s17, 0
    %p205 = por %p203, %p204
    %p206 = scmp.ne.s32.totalorder %s198, %s200
    %p207 = scmp.eq.s32.totalorder %s22, 2
    %p208 = por %p206, %p207
    %p209 = scmp.ne.s32.totalorder %s200, %s201
    %p210 = scmp.eq.s32.totalorder %s22, 0
    %p211 = por %p209, %p210
    %p212 = scmp.ne.s32.totalorder %s200, %s201
    %p213 = scmp.eq.s32.totalorder %s23, 2
    %p214 = por %p212, %p213
    %p216 = scmp.ne.s32.totalorder %s201, %s215
    %p217 = scmp.eq.s32.totalorder %s23, 0
    %p218 = por %p216, %p217
    %s219 = ssub.s32 %s17, %s24
    %p220 = scmp.eq.s32.totalorder %s219, 0
    %s222 = sadd.s32 %s221, 1
    %s223 = scalar_select %p220, %s221, %s222
    %p226 = pneg %p220
    %p227 = scmp.eq.s32.totalorder %s17, 2
    %p228 = por %p226, %p227
    %p229 = scmp.ne.s32.totalorder %s221, %s224
    %p230 = scmp.eq.s32.totalorder %s17, 0
    %p231 = por %p229, %p230
    %p232 = scmp.ne.s32.totalorder %s221, %s224
    %p233 = scmp.eq.s32.totalorder %s22, 2
    %p234 = por %p232, %p233
    %p235 = scmp.ne.s32.totalorder %s224, %s225
    %p236 = scmp.eq.s32.totalorder %s22, 0
    %p237 = por %p235, %p236
    %p238 = scmp.ne.s32.totalorder %s224, %s225
    %p239 = scmp.eq.s32.totalorder %s23, 2
    %p240 = por %p238, %p239
    %p242 = scmp.ne.s32.totalorder %s225, %s241
    %p243 = scmp.eq.s32.totalorder %s23, 0
    %p244 = por %p242, %p243
    %p245 = scmp.le.s32.totalorder 1, %s17
    %p246 = scmp.lt.s32.totalorder %s17, 4
    %p247 = pnand %p245, %p246
    %p248 = pneg %p247
    // Predicated region
    $region9: #{mlp_forward.1} parent=5 // pred_check
      _
    $region10: #{mlp_forward.1} parent=5 // pred_check_branch
      %250 = sbr.rel (%p247) target = $region12
    $region11: #{mlp_forward.1} parent=5 // pred_region
      %s251 = ssub.s32 %s17, 1
      // Predicated region
      $region13: #{mlp_forward.1} parent=11 // pred_check
        %p252 = pneg %p64
      $region14: #{mlp_forward.1} parent=11 // pred_check_branch
        %254 = sbr.rel (%p252) target = $region16
      $region15: #{mlp_forward.1} parent=11 // pred_region
        _
      $region16: #{mlp_forward.1} parent=11 // pred_fallthru
        _
      // Predicated region
      $region17: #{mlp_forward.1} parent=11 // pred_check
        %p255 = pneg %p85
      $region18: #{mlp_forward.1} parent=11 // pred_check_branch
        %257 = sbr.rel (%p255) target = $region20
      $region19: #{mlp_forward.1} parent=11 // pred_region
        _
      $region20: #{mlp_forward.1} parent=11 // pred_fallthru
        _
      // Predicated region
      $region21: #{mlp_forward.1} parent=11 // pred_check
        %p258 = pneg %p106
      $region22: #{mlp_forward.1} parent=11 // pred_check_branch
        %260 = sbr.rel (%p258) target = $region24
      $region23: #{mlp_forward.1} parent=11 // pred_region
        _
      $region24: #{mlp_forward.1} parent=11 // pred_fallthru
        _
      // Predicated region
      $region25: #{mlp_forward.1} parent=11 // pred_check
        %p261 = pneg %p127
      $region26: #{mlp_forward.1} parent=11 // pred_check_branch
        %263 = sbr.rel (%p261) target = $region28
      $region27: #{mlp_forward.1} parent=11 // pred_region
        _
      $region28: #{mlp_forward.1} parent=11 // pred_fallthru
        _
      // Predicated region
      $region29: #{mlp_forward.1} parent=11 // pred_check
        %p264 = pneg %p148
      $region30: #{mlp_forward.1} parent=11 // pred_check_branch
        %266 = sbr.rel (%p264) target = $region32
      $region31: #{mlp_forward.1} parent=11 // pred_region
        _
      $region32: #{mlp_forward.1} parent=11 // pred_fallthru
        _
      // Predicated region
      $region33: #{mlp_forward.1} parent=11 // pred_check
        %p267 = pneg %p169
      $region34: #{mlp_forward.1} parent=11 // pred_check_branch
        %269 = sbr.rel (%p267) target = $region36
      $region35: #{mlp_forward.1} parent=11 // pred_region
        _
      $region36: #{mlp_forward.1} parent=11 // pred_fallthru
        _
      // Predicated region
      $region37: #{mlp_forward.1} parent=11 // pred_check
        %p270 = pneg %p190
      $region38: #{mlp_forward.1} parent=11 // pred_check_branch
        %272 = sbr.rel (%p270) target = $region40
      $region39: #{mlp_forward.1} parent=11 // pred_region
        _
      $region40: #{mlp_forward.1} parent=11 // pred_fallthru
        _
      // Predicated region
      $region41: #{mlp_forward.1} parent=11 // pred_check
        %p273 = pneg %p211
      $region42: #{mlp_forward.1} parent=11 // pred_check_branch
        %275 = sbr.rel (%p273) target = $region44
      $region43: #{mlp_forward.1} parent=11 // pred_region
        _
      $region44: #{mlp_forward.1} parent=11 // pred_fallthru
        _
    $region12: #{mlp_forward.1} parent=5 // pred_fallthru
      _
    %p276 = scmp.lt.s32.totalorder %s17, 3
    // Predicated region
    $region45: #{mlp_forward.1} parent=5 // pred_check
      %p277 = pneg %p276
    $region46: #{mlp_forward.1} parent=5 // pred_check_branch
      %279 = sbr.rel (%p277) target = $region48
    $region47: #{mlp_forward.1} parent=5 // pred_region
      // Predicated region
      $region49: #{mlp_forward.1} parent=47 // pred_check
        %p280 = pneg %p37
      $region50: #{mlp_forward.1} parent=47 // pred_check_branch
        %282 = sbr.rel (%p280) target = $region52
      $region51: #{mlp_forward.1} parent=47 // pred_region
        %p283 = scmp.lt.s32.totalorder %s17, 2
        %s284 = scalar_select %p283, %s17, 2
        %s285 = smul.addr %s284, 8
        %s286 = scalar_lea.vmem %s0, %s285
      $region52: #{mlp_forward.1} parent=47 // pred_fallthru
        _
    $region48: #{mlp_forward.1} parent=5 // pred_fallthru
      _
    %p287 = scmp.le.s32.totalorder 1, %s17
    %p288 = scmp.lt.s32.totalorder %s17, 4
    %p289 = pnand %p287, %p288
    %p290 = pneg %p289
    // Predicated region
    $region53: #{mlp_forward.1} parent=5 // pred_check
      _
    $region54: #{mlp_forward.1} parent=5 // pred_check_branch
      %292 = sbr.rel (%p289) target = $region56
    $region55: #{mlp_forward.1} parent=5 // pred_region
      %s293 = ssub.s32 %s17, 1
      %p294 = scmp.lt.s32.totalorder %s22, 2
      %s295 = scalar_select %p294, %s22, 2
      %s296 = smul.addr %s295, 8
      %s297 = scalar_lea.vmem %s0, %s296
      %p298 = pneg %p43
      %p299 = pneg %p40
      %p300 = pneg %p64
      %p301 = pneg %p61
      %p302 = pneg %p85
      %p303 = pneg %p82
      %p304 = pneg %p106
      %p305 = pneg %p103
      %p306 = pneg %p127
      %p307 = pneg %p124
      %p308 = pneg %p148
      %p309 = pneg %p145
      %p310 = pneg %p169
      %p311 = pneg %p166
      %p312 = pneg %p190
      %p313 = pneg %p187
      %p314 = pneg %p211
      %p315 = pneg %p208
      %p316 = pneg %p237
      %p317 = pneg %p234
      %p318 = scmp.lt.s32.totalorder %s22, 2
      %s319 = scalar_select %p318, %s22, 2
      %s320 = scalar_lea.vmem %s9, %s319
      %p321 = scmp.lt.s32.totalorder %s22, 2
      %s322 = scalar_select %p321, %s22, 2
      %s323 = smul.addr %s322, 8
      %s324 = scalar_lea.vmem %s0, %s323
      %p325 = scmp.lt.s32.totalorder %s22, 2
      %s326 = scalar_select %p325, %s22, 2
      %s327 = scalar_lea.vmem %s9, %s326
      %v328 = vld [vmem:[%s324] sm:$0xff]
      %v329 = vld [vmem:[%s1] sm:$0xff]
      %v330 = vld [vmem:[%s1 + $0x8] sm:$0xff]
      %v331 = vld [vmem:[%s1 + $0x10] sm:$0xff]
      %v332 = vld [vmem:[%s1 + $0x18] sm:$0xff]
      %v333 = vld [vmem:[%s2] sm:$0x1]
      %v335 = vlaneseq
      %v336 = vshrl.u32 %v335, 7
      %v337 = vsub.s32 0, %v336
      %v338 = vrot.slane %v333, %v337
      %vm340 = vcmask 261120
      %v342 = vsel %vm340, %v328, 0
      %344 = vmatprep.subr.mxu0 0.0
      %345 = vmatpush1.msra.mxu0 %v329
      %346 = vmatprep.subr.mxu0 0.0
      %347 = vmatpush1.msra.mxu0 %v330
      %348 = vmatprep.subr.mxu0 0.0
      %349 = vmatpush1.msra.mxu0 %v331
      %350 = vmatprep.subr.mxu0 0.0
      %351 = vmatpush1.msra.mxu0 %v332
      %352 = vmatprep.subr.mxu0 0.0
      %353 = vmatpush1.msra.mxu0 0.0
      %354 = vmatprep.subr.mxu0 0.0
      %355 = vmatpush1.msra.mxu0 0.0
      %356 = vmatprep.subr.mxu0 0.0
      %357 = vmatpush1.msra.mxu0 0.0
      %358 = vmatprep.subr.mxu0 0.0
      %359 = vmatpush1.msra.mxu0 0.0
      %360 = vmatprep.subr.mxu0 0.0
      %361 = vmatpush1.msra.mxu0 0.0
      %362 = vmatprep.subr.mxu0 0.0
      %363 = vmatpush1.msra.mxu0 0.0
      %364 = vmatprep.subr.mxu0 0.0
      %365 = vmatpush1.msra.mxu0 0.0
      %366 = vmatprep.subr.mxu0 0.0
      %367 = vmatpush1.msra.mxu0 0.0
      %368 = vmatprep.subr.mxu0 0.0
      %369 = vmatpush1.msra.mxu0 0.0
      %370 = vmatprep.subr.mxu0 0.0
      %371 = vmatpush1.msra.mxu0 0.0
      %372 = vmatprep.subr.mxu0 0.0
      %373 = vmatpush1.msra.mxu0 0.0
      %374 = vmatprep.subr.mxu0 0.0
      %375 = vmatpush1.msra.mxu0 0.0
      %376 = vmatprep.subr.mxu0 0.0
      %377 = vmatpush1.msra.mxu0 0.0
      %378 = vmatprep.subr.mxu0 0.0
      %379 = vmatpush1.msra.mxu0 0.0
      %380 = vmatprep.subr.mxu0 0.0
      %381 = vmatpush1.msra.mxu0 0.0
      %382 = vmatprep.subr.mxu0 0.0
      %383 = vmatpush1.msra.mxu0 0.0
      %384 = vmatprep.subr.mxu0 0.0
      %385 = vmatpush1.msra.mxu0 0.0
      %386 = vmatprep.subr.mxu0 0.0
      %387 = vmatpush1.msra.mxu0 0.0
      %388 = vmatprep.subr.mxu0 0.0
      %389 = vmatpush1.msra.mxu0 0.0
      %390 = vmatprep.subr.mxu0 0.0
      %391 = vmatpush1.msra.mxu0 0.0
      %392 = vmatprep.subr.mxu0 0.0
      %393 = vmatpush1.msra.mxu0 0.0
      %394 = vmatprep.subr.mxu0 0.0
      %395 = vmatpush1.msra.mxu0 0.0
      %396 = vmatprep.subr.mxu0 0.0
      %397 = vmatpush1.msra.mxu0 0.0
      %398 = vmatprep.subr.mxu0 0.0
      %399 = vmatpush1.msra.mxu0 0.0
      %400 = vmatprep.subr.mxu0 0.0
      %401 = vmatpush1.msra.mxu0 0.0
      %402 = vmatprep.subr.mxu0 0.0
      %403 = vmatpush1.msra.mxu0 0.0
      %404 = vmatprep.subr.mxu0 0.0
      %405 = vmatpush1.msra.mxu0 0.0
      %406 = vmatprep.subr.mxu0 0.0
      %407 = vmatpush1.msra.mxu0 0.0
      %408 = vmatprep.mubr.f32.mxu0 0.0
      %409 = vmatmul.mubr.f32.gmra.mrb[0].mxu0 %v342
      %v410 = vpop.f32.mrb[0].mxu0
      %v411 = vadd.f32 %v338, %v410
      %v412 = vpop.f32.mrb[0].mxu0
      %413 = vdwg.mxu0
      %v414 = vmul.f32 %v411, 0.01
      %v415 = vmax.f32 %v411, %v414
      %v416 = vld [vmem:[%s3] sm:$0xff]
      %v417 = vld [vmem:[%s3 + $0x8] sm:$0xff]
      %v418 = vld [vmem:[%s3 + $0x10] sm:$0xff]
      %v419 = vld [vmem:[%s3 + $0x18] sm:$0xff]
      %v420 = vld [vmem:[%s3 + $0x20] sm:$0xff]
      %v421 = vld [vmem:[%s3 + $0x28] sm:$0xff]
      %v422 = vld [vmem:[%s3 + $0x30] sm:$0xff]
      %v423 = vld [vmem:[%s3 + $0x38] sm:$0xff]
      %v424 = vld [vmem:[%s3 + $0x40] sm:$0xff]
      %v425 = vld [vmem:[%s3 + $0x48] sm:$0xff]
      %v426 = vld [vmem:[%s3 + $0x50] sm:$0xff]
      %v427 = vld [vmem:[%s3 + $0x58] sm:$0xff]
      %v428 = vld [vmem:[%s3 + $0x60] sm:$0xff]
      %v429 = vld [vmem:[%s3 + $0x68] sm:$0xff]
      %v430 = vld [vmem:[%s3 + $0x70] sm:$0xff]
      %v431 = vld [vmem:[%s3 + $0x78] sm:$0xff]
      %v432 = vld [vmem:[%s4] sm:$0x1]
      %v434 = vlaneseq
      %v435 = vshrl.u32 %v434, 7
      %v436 = vsub.s32 0, %v435
      %v437 = vrot.slane %v432, %v436
      %439 = vmatprep.subr.mxu0 0.0
      %440 = vmatpush1.msra.mxu0 %v416
      %441 = vmatprep.subr.mxu0 0.0
      %442 = vmatpush1.msra.mxu0 %v417
      %443 = vmatprep.subr.mxu0 0.0
      %444 = vmatpush1.msra.mxu0 %v418
      %445 = vmatprep.subr.mxu0 0.0
      %446 = vmatpush1.msra.mxu0 %v419
      %447 = vmatprep.subr.mxu0 0.0
      %448 = vmatpush1.msra.mxu0 %v420
      %449 = vmatprep.subr.mxu0 0.0
      %450 = vmatpush1.msra.mxu0 %v421
      %451 = vmatprep.subr.mxu0 0.0
      %452 = vmatpush1.msra.mxu0 %v422
      %453 = vmatprep.subr.mxu0 0.0
      %454 = vmatpush1.msra.mxu0 %v423
      %455 = vmatprep.subr.mxu0 0.0
      %456 = vmatpush1.msra.mxu0 %v424
      %457 = vmatprep.subr.mxu0 0.0
      %458 = vmatpush1.msra.mxu0 %v425
      %459 = vmatprep.subr.mxu0 0.0
      %460 = vmatpush1.msra.mxu0 %v426
      %461 = vmatprep.subr.mxu0 0.0
      %462 = vmatpush1.msra.mxu0 %v427
      %463 = vmatprep.subr.mxu0 0.0
      %464 = vmatpush1.msra.mxu0 %v428
      %465 = vmatprep.subr.mxu0 0.0
      %466 = vmatpush1.msra.mxu0 %v429
      %467 = vmatprep.subr.mxu0 0.0
      %468 = vmatpush1.msra.mxu0 %v430
      %469 = vmatprep.subr.mxu0 0.0
      %470 = vmatpush1.msra.mxu0 %v431
      %471 = vmatprep.subr.mxu0 0.0
      %472 = vmatpush1.msra.mxu0 0.0
      %473 = vmatprep.subr.mxu0 0.0
      %474 = vmatpush1.msra.mxu0 0.0
      %475 = vmatprep.subr.mxu0 0.0
      %476 = vmatpush1.msra.mxu0 0.0
      %477 = vmatprep.subr.mxu0 0.0
      %478 = vmatpush1.msra.mxu0 0.0
      %479 = vmatprep.subr.mxu0 0.0
      %480 = vmatpush1.msra.mxu0 0.0
      %481 = vmatprep.subr.mxu0 0.0
      %482 = vmatpush1.msra.mxu0 0.0
      %483 = vmatprep.subr.mxu0 0.0
      %484 = vmatpush1.msra.mxu0 0.0
      %485 = vmatprep.subr.mxu0 0.0
      %486 = vmatpush1.msra.mxu0 0.0
      %487 = vmatprep.subr.mxu0 0.0
      %488 = vmatpush1.msra.mxu0 0.0
      %489 = vmatprep.subr.mxu0 0.0
      %490 = vmatpush1.msra.mxu0 0.0
      %491 = vmatprep.subr.mxu0 0.0
      %492 = vmatpush1.msra.mxu0 0.0
      %493 = vmatprep.subr.mxu0 0.0
      %494 = vmatpush1.msra.mxu0 0.0
      %495 = vmatprep.subr.mxu0 0.0
      %496 = vmatpush1.msra.mxu0 0.0
      %497 = vmatprep.subr.mxu0 0.0
      %498 = vmatpush1.msra.mxu0 0.0
      %499 = vmatprep.subr.mxu0 0.0
      %500 = vmatpush1.msra.mxu0 0.0
      %501 = vmatprep.subr.mxu0 0.0
      %502 = vmatpush1.msra.mxu0 0.0
      %503 = vmatprep.mubr.f32.mxu0 0.0
      %504 = vmatmul.mubr.f32.gmra.mrb[0].mxu0 %v415
      %v505 = vpop.f32.mrb[0].mxu0
      %v506 = vadd.f32 %v437, %v505
      %v507 = vpop.f32.mrb[0].mxu0
      %508 = vdwg.mxu0
      %v509 = vmul.f32 %v506, 0.01
      %v510 = vmax.f32 %v506, %v509
      %v511 = vld [vmem:[%s5] sm:$0xff]
      %v512 = vld [vmem:[%s5 + $0x8] sm:$0xff]
      %v513 = vld [vmem:[%s5 + $0x10] sm:$0xff]
      %v514 = vld [vmem:[%s5 + $0x18] sm:$0xff]
      %v515 = vld [vmem:[%s5 + $0x20] sm:$0xff]
      %v516 = vld [vmem:[%s5 + $0x28] sm:$0xff]
      %v517 = vld [vmem:[%s5 + $0x30] sm:$0xff]
      %v518 = vld [vmem:[%s5 + $0x38] sm:$0xff]
      %v519 = vld [vmem:[%s6] sm:$0x1]
      %v521 = vlaneseq
      %v522 = vshrl.u32 %v521, 7
      %v523 = vsub.s32 0, %v522
      %v524 = vrot.slane %v519, %v523
      %vm526 = vcmask 523264
      %v528 = vsel %vm526, %v510, 0
      %530 = vmatprep.subr.mxu0 0.0
      %531 = vmatpush1.msra.mxu0 %v511
      %532 = vmatprep.subr.mxu0 0.0
      %533 = vmatpush1.msra.mxu0 %v512
      %534 = vmatprep.subr.mxu0 0.0
      %535 = vmatpush1.msra.mxu0 %v513
      %536 = vmatprep.subr.mxu0 0.0
      %537 = vmatpush1.msra.mxu0 %v514
      %538 = vmatprep.subr.mxu0 0.0
      %539 = vmatpush1.msra.mxu0 %v515
      %540 = vmatprep.subr.mxu0 0.0
      %541 = vmatpush1.msra.mxu0 %v516
      %542 = vmatprep.subr.mxu0 0.0
      %543 = vmatpush1.msra.mxu0 %v517
      %544 = vmatprep.subr.mxu0 0.0
      %545 = vmatpush1.msra.mxu0 %v518
      %546 = vmatprep.subr.mxu0 0.0
      %547 = vmatpush1.msra.mxu0 0.0
      %548 = vmatprep.subr.mxu0 0.0
      %549 = vmatpush1.msra.mxu0 0.0
      %550 = vmatprep.subr.mxu0 0.0
      %551 = vmatpush1.msra.mxu0 0.0
      %552 = vmatprep.subr.mxu0 0.0
      %553 = vmatpush1.msra.mxu0 0.0
      %554 = vmatprep.subr.mxu0 0.0
      %555 = vmatpush1.msra.mxu0 0.0
      %556 = vmatprep.subr.mxu0 0.0
      %557 = vmatpush1.msra.mxu0 0.0
      %558 = vmatprep.subr.mxu0 0.0
      %559 = vmatpush1.msra.mxu0 0.0
      %560 = vmatprep.subr.mxu0 0.0
      %561 = vmatpush1.msra.mxu0 0.0
      %562 = vmatprep.subr.mxu0 0.0
      %563 = vmatpush1.msra.mxu0 0.0
      %564 = vmatprep.subr.mxu0 0.0
      %565 = vmatpush1.msra.mxu0 0.0
      %566 = vmatprep.subr.mxu0 0.0
      %567 = vmatpush1.msra.mxu0 0.0
      %568 = vmatprep.subr.mxu0 0.0
      %569 = vmatpush1.msra.mxu0 0.0
      %570 = vmatprep.subr.mxu0 0.0
      %571 = vmatpush1.msra.mxu0 0.0
      %572 = vmatprep.subr.mxu0 0.0
      %573 = vmatpush1.msra.mxu0 0.0
      %574 = vmatprep.subr.mxu0 0.0
      %575 = vmatpush1.msra.mxu0 0.0
      %576 = vmatprep.subr.mxu0 0.0
      %577 = vmatpush1.msra.mxu0 0.0
      %578 = vmatprep.subr.mxu0 0.0
      %579 = vmatpush1.msra.mxu0 0.0
      %580 = vmatprep.subr.mxu0 0.0
      %581 = vmatpush1.msra.mxu0 0.0
      %582 = vmatprep.subr.mxu0 0.0
      %583 = vmatpush1.msra.mxu0 0.0
      %584 = vmatprep.subr.mxu0 0.0
      %585 = vmatpush1.msra.mxu0 0.0
      %586 = vmatprep.subr.mxu0 0.0
      %587 = vmatpush1.msra.mxu0 0.0
      %588 = vmatprep.subr.mxu0 0.0
      %589 = vmatpush1.msra.mxu0 0.0
      %590 = vmatprep.subr.mxu0 0.0
      %591 = vmatpush1.msra.mxu0 0.0
      %592 = vmatprep.subr.mxu0 0.0
      %593 = vmatpush1.msra.mxu0 0.0
      %594 = vmatprep.mubr.f32.mxu0 0.0
      %595 = vmatmul.mubr.f32.gmra.mrb[0].mxu0 %v528
      %v596 = vpop.f32.mrb[0].mxu0
      %v597 = vadd.f32 %v524, %v596
      %v598 = vpop.f32.mrb[0].mxu0
      %599 = vdwg.mxu0
      %v600 = vmul.f32 %v597, 0.01
      %v601 = vmax.f32 %v597, %v600
      %v602 = vld [vmem:[%s7] sm:$0x1]
      %v603 = vld [vmem:[#allocation2] sm:$0x1]
      %605 = vset.pattern.permute.xlu0 0
      %606 = vperm.xlu0 %605, %v603
      %v607 = vpop.permute.xlu0 %606
      %v609 = vlaneseq
      %v610 = vshrl.u32 %v609, 7
      %v611 = vsub.s32 0, %v610
      %v612 = vrot.slane %v607, %v611
      %vm613 = vcmask 130048
      %v615 = vsel %vm613, %v602, 0
      %v618 = vsel %vm613, %v601, 0
      %620 = vmatprep.subr.mxu0 0.0
      %621 = vmatpush1.xpose.msra.mxu0 %v618
      %622 = vmatprep.subr.mxu0 0.0
      %623 = vmatpush1.xpose.msra.mxu0 0.0
      %624 = vmatprep.subr.mxu0 0.0
      %625 = vmatpush1.xpose.msra.mxu0 0.0
      %626 = vmatprep.subr.mxu0 0.0
      %627 = vmatpush1.xpose.msra.mxu0 0.0
      %628 = vmatprep.subr.mxu0 0.0
      %629 = vmatpush1.xpose.msra.mxu0 0.0
      %630 = vmatprep.subr.mxu0 0.0
      %631 = vmatpush1.xpose.msra.mxu0 0.0
      %632 = vmatprep.subr.mxu0 0.0
      %633 = vmatpush1.xpose.msra.mxu0 0.0
      %634 = vmatprep.subr.mxu0 0.0
      %635 = vmatpush1.xpose.msra.mxu0 0.0
      %636 = vmatprep.subr.mxu0 0.0
      %637 = vmatpush1.xpose.msra.mxu0 0.0
      %638 = vmatprep.subr.mxu0 0.0
      %639 = vmatpush1.xpose.msra.mxu0 0.0
      %640 = vmatprep.subr.mxu0 0.0
      %641 = vmatpush1.xpose.msra.mxu0 0.0
      %642 = vmatprep.subr.mxu0 0.0
      %643 = vmatpush1.xpose.msra.mxu0 0.0
      %644 = vmatprep.subr.mxu0 0.0
      %645 = vmatpush1.xpose.msra.mxu0 0.0
      %646 = vmatprep.subr.mxu0 0.0
      %647 = vmatpush1.xpose.msra.mxu0 0.0
      %648 = vmatprep.subr.mxu0 0.0
      %649 = vmatpush1.xpose.msra.mxu0 0.0
      %650 = vmatprep.subr.mxu0 0.0
      %651 = vmatpush1.xpose.msra.mxu0 0.0
      %652 = vmatprep.subr.mxu0 0.0
      %653 = vmatpush1.xpose.msra.mxu0 0.0
      %654 = vmatprep.subr.mxu0 0.0
      %655 = vmatpush1.xpose.msra.mxu0 0.0
      %656 = vmatprep.subr.mxu0 0.0
      %657 = vmatpush1.xpose.msra.mxu0 0.0
      %658 = vmatprep.subr.mxu0 0.0
      %659 = vmatpush1.xpose.msra.mxu0 0.0
      %660 = vmatprep.subr.mxu0 0.0
      %661 = vmatpush1.xpose.msra.mxu0 0.0
      %662 = vmatprep.subr.mxu0 0.0
      %663 = vmatpush1.xpose.msra.mxu0 0.0
      %664 = vmatprep.subr.mxu0 0.0
      %665 = vmatpush1.xpose.msra.mxu0 0.0
      %666 = vmatprep.subr.mxu0 0.0
      %667 = vmatpush1.xpose.msra.mxu0 0.0
      %668 = vmatprep.subr.mxu0 0.0
      %669 = vmatpush1.xpose.msra.mxu0 0.0
      %670 = vmatprep.subr.mxu0 0.0
      %671 = vmatpush1.xpose.msra.mxu0 0.0
      %672 = vmatprep.subr.mxu0 0.0
      %673 = vmatpush1.xpose.msra.mxu0 0.0
      %674 = vmatprep.subr.mxu0 0.0
      %675 = vmatpush1.xpose.msra.mxu0 0.0
      %676 = vmatprep.subr.mxu0 0.0
      %677 = vmatpush1.xpose.msra.mxu0 0.0
      %678 = vmatprep.subr.mxu0 0.0
      %679 = vmatpush1.xpose.msra.mxu0 0.0
      %680 = vmatprep.subr.mxu0 0.0
      %681 = vmatpush1.xpose.msra.mxu0 0.0
      %682 = vmatprep.subr.mxu0 0.0
      %683 = vmatpush1.xpose.msra.mxu0 0.0
      %684 = vmatprep.mubr.f32.mxu0 0.0
      %685 = vmatmul.mubr.f32.gmra.mrb[0].mxu0 %v615
      %v686 = vpop.f32.mrb[0].mxu0
      %v687 = vadd.f32 %v612, %v686
      %v688 = vpop.f32.mrb[0].mxu0
      %689 = vdwg.mxu0
      %vm690 = vcmask 57344
      %691 = vst.msk [vmem:[%s327] sm:$0x1] %vm690, %v687
      %p692 = scmp.lt.s32.totalorder %s22, 2
      %s693 = scalar_select %p692, %s22, 2
      %s694 = scalar_lea.vmem %s9, %s693
      // Predicated region
      $region57: #{mlp_forward.1} parent=55 // pred_check
        %p695 = pneg %p234
      $region58: #{mlp_forward.1} parent=55 // pred_check_branch
        %697 = sbr.rel (%p695) target = $region60
      $region59: #{mlp_forward.1} parent=55 // pred_region
        _
      $region60: #{mlp_forward.1} parent=55 // pred_fallthru
        _
    $region56: #{mlp_forward.1} parent=5 // pred_fallthru
      _
    %p698 = scmp.le.s32.totalorder 2, %s17
    // Predicated region
    $region61: #{mlp_forward.1} parent=5 // pred_check
      %p699 = pneg %p698
    $region62: #{mlp_forward.1} parent=5 // pred_check_branch
      %701 = sbr.rel (%p699) target = $region64
    $region63: #{mlp_forward.1} parent=5 // pred_region
      %s702 = ssub.s32 %s17, 2
      // Predicated region
      $region65: #{mlp_forward.1} parent=63 // pred_check
        %p703 = pneg %p240
      $region66: #{mlp_forward.1} parent=63 // pred_check_branch
        %705 = sbr.rel (%p703) target = $region68
      $region67: #{mlp_forward.1} parent=63 // pred_region
        %p706 = scmp.lt.s32.totalorder %s23, 2
        %s707 = scalar_select %p706, %s23, 2
        %s708 = scalar_lea.vmem %s9, %s707
      $region68: #{mlp_forward.1} parent=63 // pred_fallthru
        _
    $region64: #{mlp_forward.1} parent=5 // pred_fallthru
      _
  $region6: #{mlp_forward.1} parent=0 // loop_footer
    %s21 = sadd.s32 1, %s17
  $region7: #{mlp_forward.1} parent=0 // loop_footer_branch
    %16 = sbr.rel target = $region3
  $region8: #{mlp_forward.1} parent=0 // loop_exit
    _

</llo_original>
